<compile_context>
chip_gen: v7x
topology: tpu7x:2x2x1
jax: 0.10.0
libtpu: 0.0.40
codegen_flags: <defaults>
</compile_context>

<pallas_src>
import functools
import math

import jax
import jax.numpy as jnp
from jax import lax
from jax.experimental import pallas as pl
from jax.experimental.pallas import tpu as pltpu


def _resnet_block_kernel(x_ref, ss_ref, w_ref, p_ref, o_ref, *, l_real):
    # x_ref : (Bt, C, Lp)  input tile, NCL layout (C -> sublanes, Lp -> lanes)
    # ss_ref: (Bt, C, 2)   [:, :, 0] = scale+1, [:, :, 1] = shift
    # w_ref : (2, 3C, C)   bf16 fused conv weights, taps stacked on the M axis
    # p_ref : (C, 4)       [b1 | g1*sqrt(C) | b2 | g2*sqrt(C)]
    # o_ref : (Bt, C, Lp)
    Bt, C, Lp = x_ref.shape

    # Lane masks from a (1, Lp) iota; jnp.where broadcasts them over channels.
    lane = lax.broadcasted_iota(jnp.int32, (1, Lp), 1)
    not_first = lane != 0
    not_last = lane != (Lp - 1)
    valid = lane < l_real                        # real (un-padded) lanes

    # Resident per-channel params (hoisted out of the batch loop).
    p = p_ref[...].astype(jnp.float32)           # (C, 4)
    b1, g1, b2, g2 = p[:, 0:1], p[:, 1:2], p[:, 2:3], p[:, 3:4]

    def conv_sig_norm(h, w_idx, b_col, g_col):
        # k=3 / pad=1 conv as ONE (3C, C) @ (C, Lp) MXU matmul (bf16 in, f32 acc);
        # tap outputs are shifted with pltpu.roll (XLU) + boundary masks instead
        # of building a (3C, Lp) shifted-input stack.
        y_all = jnp.dot(w_ref[w_idx], h.astype(jnp.bfloat16),
                        preferred_element_type=jnp.float32)          # (3C, Lp)
        y = (y_all[C:2 * C]
             + jnp.where(not_first, pltpu.roll(y_all[:C], 1, 1), 0.0)
             + jnp.where(not_last, pltpu.roll(y_all[2 * C:], Lp - 1, 1), 0.0)
             + b_col)
        y = jax.nn.sigmoid(y)
        # RMSNorm over the channel (sublane) axis; gain already carries sqrt(C).
        sumsq = jnp.sum(y * y, axis=0, keepdims=True)                # (1, Lp)
        inv = lax.rsqrt(jnp.maximum(sumsq, 1e-24))                   # EUP slot
        return y * inv * g_col

    def body(i, carry):
        x = x_ref[i].astype(jnp.float32)                             # (C, Lp)
        ss = ss_ref[i].astype(jnp.float32)                           # (C, 2)
        # block1: conv -> sigmoid -> RMSNorm -> *(scale+1)+shift -> sigmoid
        h = conv_sig_norm(x, 0, b1, g1)
        h = jax.nn.sigmoid(h * ss[:, 0:1] + ss[:, 1:2])
        # dropout = 0.0 / eval -> identity.  Zero the padded lanes so conv2's
        # right boundary sees the true zero padding.
        h = jnp.where(valid, h, 0.0)
        # block2: conv -> sigmoid -> RMSNorm -> sigmoid
        h = conv_sig_norm(h, 1, b2, g2)
        h = jax.nn.sigmoid(h)
        # residual (res_conv = Identity, dim_out == dim)
        o_ref[i] = (h + x).astype(o_ref.dtype)
        return carry

    lax.fori_loop(0, Bt, body, 0, unroll=True)


def resnet_block_pallas(x_ncl, time_emb, params, *, bt=None):
    """x_ncl: [B, dim, num] (PyTorch NCL). time_emb: [B, T]. Returns [B, dim, num]."""
    B, C, L = x_ncl.shape
    # TODO(synk): non-multiple-of-8 channel counts need channel padding plus a
    # channel mask inside the RMSNorm reduction; not needed for this module.
    assert C % 8 == 0, "dim must be a multiple of 8 (sublane alignment)"
    f32 = jnp.float32

    # ---- time MLP hoisted out of the kernel: one (B,T)@(T,2C) XLA matmul ------
    t = time_emb.astype(f32) / 500.0
    t = t * jax.nn.sigmoid(t)                                             # SiLU
    ss = t @ params["w_mlp"].astype(f32).T + params["b_mlp"].astype(f32)  # (B, 2C)
    ss_pack = jnp.stack([ss[:, :C] + 1.0, ss[:, C:]], axis=-1)            # (B, C, 2)

    # ---- conv weights: (C_out, C_in, 3) -> tap-stacked (3C_out, C_in), bf16 ---
    def stack_taps(w):
        w = w.astype(f32)
        return jnp.concatenate([w[:, :, 0], w[:, :, 1], w[:, :, 2]], axis=0)

    w_all = jnp.stack([stack_taps(params["w_conv1"]),
                       stack_taps(params["w_conv2"])],
                      axis=0).astype(jnp.bfloat16)                         # (2, 3C, C)

    sqrt_c = math.sqrt(C)
    p_pack = jnp.stack([params["b_conv1"].astype(f32),
                        params["g1"].astype(f32) * sqrt_c,    # fold sqrt(C) into gain
                        params["b_conv2"].astype(f32),
                        params["g2"].astype(f32) * sqrt_c], axis=-1)       # (C, 4)

    # ---- lane-dense padding: L -> Lp (multiple of 128) ------------------------
    Lp = ((L + 127) // 128) * 128
    x_p = jnp.pad(x_ncl, ((0, 0), (0, 0), (0, Lp - L))) if Lp != L else x_ncl

    # ---- batch blocking: (bt, C, Lp) tiles, grid = (ceil(B/bt),) --------------
    if bt is None:
        bt = max(1, min(B, (1 << 20) // (C * Lp * 4)))   # ~1 MiB input tile / step
        while bt > 1 and -(-B // bt) < 2:                # keep >= 2 steps (v7x: 2 TCs)
            bt -= 1
    n_steps = -(-B // bt)
    Bp = n_steps * bt
    if Bp != B:
        x_p = jnp.pad(x_p, ((0, Bp - B), (0, 0), (0, 0)))
        ss_pack = jnp.pad(ss_pack, ((0, Bp - B), (0, 0), (0, 0)))

    # ---- raise the scoped VMEM limit only when the footprint actually needs it
    vmem_est = 4 * (4 * bt * C * Lp      # double-buffered x + out tiles (f32)
                    + 9 * C * Lp         # per-sample live temporaries (y_all, h, ...)
                    + 8 * C) + 2 * 6 * C * C
    vmem_limit = (None if vmem_est < 24 * 1024 * 1024
                  else min(2 * vmem_est, 100 * 1024 * 1024))

    cost = pl.CostEstimate(
        flops=2 * (2 * 3 * C * C * Lp) * Bp + 20 * Bp * C * Lp,
        transcendentals=4 * Bp * C * Lp + 2 * Bp * Lp,
        bytes_accessed=4 * (2 * Bp * C * Lp + 2 * Bp * C + 4 * C) + 2 * 6 * C * C,
    )

    out = pl.pallas_call(
        functools.partial(_resnet_block_kernel, l_real=L),
        out_shape=jax.ShapeDtypeStruct((Bp, C, Lp), x_ncl.dtype),
        grid_spec=pltpu.PrefetchScalarGridSpec(
            num_scalar_prefetch=0,
            grid=(n_steps,),
            in_specs=[
                pl.BlockSpec((bt, C, Lp), lambda b: (b, 0, 0)),     # x (NCL tile)
                pl.BlockSpec((bt, C, 2), lambda b: (b, 0, 0)),      # [scale+1 | shift]
                pl.BlockSpec((2, 3 * C, C), lambda b: (0, 0, 0)),   # fused conv weights
                pl.BlockSpec((C, 4), lambda b: (0, 0)),             # [b1|g1|b2|g2]
            ],
            out_specs=pl.BlockSpec((bt, C, Lp), lambda b: (b, 0, 0)),
        ),
        compiler_params=pltpu.CompilerParams(
            dimension_semantics=("parallel",),
            vmem_limit_bytes=vmem_limit),
        cost_estimate=cost,
    )(x_p, ss_pack, w_all, p_pack)

    return out[:B, :, :L]


# ---------------------- pure-JAX reference (for checking) -------------------
def resnet_block_ref(x_ncl, time_emb, params):
    B, C, L = x_ncl.shape
    te = time_emb / 500.0
    te = te * jax.nn.sigmoid(te)
    ss = te @ params["w_mlp"].T + params["b_mlp"]               # [B, 2C]
    scale = ss[:, :C][:, :, None]
    shift = ss[:, C:][:, :, None]

    def block(h, w, bias, g, apply_ss):
        y = lax.conv_general_dilated(
            h, w, window_strides=(1,), padding=[(1, 1)],
            dimension_numbers=("NCH", "OIH", "NCH")) + bias[None, :, None]
        y = jax.nn.sigmoid(y)
        nrm = jnp.sqrt(jnp.sum(y * y, axis=1, keepdims=True))
        y = y / jnp.maximum(nrm, 1e-12) * g[None, :, None] * math.sqrt(C)
        if apply_ss:
            y = y * (scale + 1.0) + shift
        return jax.nn.sigmoid(y)

    h = block(x_ncl, params["w_conv1"], params["b_conv1"], params["g1"], True)
    h = block(h, params["w_conv2"], params["b_conv2"], params["g2"], False)
    return h + x_ncl


if __name__ == "__main__":
    B, C, L, T = 2, 8, 16, 32      # batch, dim, num(points), time_emb_dim
    key = jax.random.PRNGKey(0)
    ks = jax.random.split(key, 8)

    x = jax.random.normal(ks[0], (B, C, L), dtype=jnp.float32)
    time_emb = jax.random.normal(ks[1], (B, T), dtype=jnp.float32) * 100.0

    params = {
        "w_mlp":   jax.random.normal(ks[2], (2 * C, T), dtype=jnp.float32) * 0.1,
        "b_mlp":   jax.random.normal(ks[3], (2 * C,),   dtype=jnp.float32) * 0.1,
        "w_conv1": jax.random.normal(ks[4], (C, C, 3),  dtype=jnp.float32) * 0.2,
        "b_conv1": jax.random.normal(ks[5], (C,),       dtype=jnp.float32) * 0.1,
        "g1":      jnp.ones((C,), dtype=jnp.float32),
        "w_conv2": jax.random.normal(ks[6], (C, C, 3),  dtype=jnp.float32) * 0.2,
        "b_conv2": jax.random.normal(ks[7], (C,),       dtype=jnp.float32) * 0.1,
        "g2":      jnp.ones((C,), dtype=jnp.float32),
    }

    out = jax.block_until_ready(resnet_block_pallas(x, time_emb, params))
    ref = jax.block_until_ready(resnet_block_ref(x, time_emb, params))

    assert out.shape == (B, C, L)
    err = float(jnp.max(jnp.abs(out - ref)))
    # bf16 MXU operands (f32 accumulation) vs the pure-f32 reference -> loosened tol.
    assert err < 3e-2, f"mismatch vs reference: max abs err = {err}"

    print("KERNEL_OK")
</pallas_src>

<mosaic_0001>
module attributes {stable_mosaic.version = 11 : i64} {
  func.func @_resnet_block_kernel(%arg0: i32, %arg1: memref<1x8x128xf32, #tpu.memory_space<vmem>>, %arg2: memref<1x8x2xf32, #tpu.memory_space<vmem>>, %arg3: memref<2x24x8xbf16, #tpu.memory_space<vmem>>, %arg4: memref<8x4xf32, #tpu.memory_space<vmem>>, %arg5: memref<1x8x128xf32, #tpu.memory_space<vmem>>) attributes {dimension_semantics = [#tpu.dimension_semantics<parallel>], iteration_bounds = array<i64: 2>, scalar_prefetch = 0 : i64, scratch_operands = 0 : i64, tpu.core_type = #tpu.core_type<tc>, window_params = [{transform_indices = @transform_0, window_bounds = array<i64: 1, 8, 128>}, {transform_indices = @transform_1, window_bounds = array<i64: 1, 8, 2>}, {pipeline_mode = #tpu.pipeline_mode<synchronous>, transform_indices = @transform_2, window_bounds = array<i64: 2, 24, 8>}, {pipeline_mode = #tpu.pipeline_mode<synchronous>, transform_indices = @transform_3, window_bounds = array<i64: 8, 4>}, {transform_indices = @transform_4, window_bounds = array<i64: 1, 8, 128>}]} {
    %0 = tpu.iota {dimensions = array<i32: 1>} : vector<1x128xi32>
    %c0_i32 = arith.constant 0 : i32
    %1 = vector.broadcast %c0_i32 : i32 to vector<1x128xi32>
    %2 = arith.cmpi ne, %0, %1 : vector<1x128xi32>
    %c127_i32 = arith.constant 127 : i32
    %3 = vector.broadcast %c127_i32 : i32 to vector<1x128xi32>
    %4 = arith.cmpi ne, %0, %3 : vector<1x128xi32>
    %c16_i32 = arith.constant 16 : i32
    %5 = vector.broadcast %c16_i32 : i32 to vector<1x128xi32>
    %6 = arith.cmpi slt, %0, %5 : vector<1x128xi32>
    %c0 = arith.constant 0 : index
    %c0_0 = arith.constant 0 : index
    %7 = vector.load %arg4[%c0, %c0_0] : memref<8x4xf32, #tpu.memory_space<vmem>>, vector<8x4xf32>
    %8 = vector.extract_strided_slice %7 {offsets = [0, 0], sizes = [8, 1], strides = [1, 1]} : vector<8x4xf32> to vector<8x1xf32>
    %9 = vector.extract_strided_slice %7 {offsets = [0, 1], sizes = [8, 1], strides = [1, 1]} : vector<8x4xf32> to vector<8x1xf32>
    %10 = vector.extract_strided_slice %7 {offsets = [0, 2], sizes = [8, 1], strides = [1, 1]} : vector<8x4xf32> to vector<8x1xf32>
    %11 = vector.extract_strided_slice %7 {offsets = [0, 3], sizes = [8, 1], strides = [1, 1]} : vector<8x4xf32> to vector<8x1xf32>
    %c0_i32_1 = arith.constant 0 : i32
    %12 = arith.index_cast %c0_i32_1 : i32 to index
    %c0_2 = arith.constant 0 : index
    %c0_3 = arith.constant 0 : index
    %13 = vector.load %arg1[%12, %c0_2, %c0_3] : memref<1x8x128xf32, #tpu.memory_space<vmem>>, vector<1x8x128xf32>
    %14 = vector.shape_cast %13 : vector<1x8x128xf32> to vector<8x128xf32>
    %15 = arith.index_cast %c0_i32_1 : i32 to index
    %c0_4 = arith.constant 0 : index
    %c0_5 = arith.constant 0 : index
    %16 = vector.load %arg2[%15, %c0_4, %c0_5] : memref<1x8x2xf32, #tpu.memory_space<vmem>>, vector<1x8x2xf32>
    %17 = vector.shape_cast %16 : vector<1x8x2xf32> to vector<8x2xf32>
    %c0_6 = arith.constant 0 : index
    %c0_7 = arith.constant 0 : index
    %c0_8 = arith.constant 0 : index
    %18 = vector.load %arg3[%c0_6, %c0_7, %c0_8] : memref<2x24x8xbf16, #tpu.memory_space<vmem>>, vector<1x24x8xbf16>
    %19 = vector.shape_cast %18 : vector<1x24x8xbf16> to vector<24x8xbf16>
    %20 = arith.truncf %14 : vector<8x128xf32> to vector<8x128xbf16>
    %cst = arith.constant dense<0.000000e+00> : vector<24x128xf32>
    %21 = tpu.matmul %19, %20, %cst {dimension_numbers = #tpu.dot_dimension_numbers<[1], [0], [0], [1], [0, 0, 1, 1], [], []>} : vector<24x8xbf16>, vector<8x128xbf16>, vector<24x128xf32> -> vector<24x128xf32>
    %22 = vector.extract_strided_slice %21 {offsets = [8, 0], sizes = [8, 128], strides = [1, 1]} : vector<24x128xf32> to vector<8x128xf32>
    %23 = vector.extract_strided_slice %21 {offsets = [0, 0], sizes = [8, 128], strides = [1, 1]} : vector<24x128xf32> to vector<8x128xf32>
    %c1_i32 = arith.constant 1 : i32
    %24 = tpu.dynamic_rotate %23 by %c1_i32 dim 1 : vector<8x128xf32>, i32 -> vector<8x128xf32>
    %cst_9 = arith.constant 0.000000e+00 : f32
    %25 = vector.shape_cast %2 : vector<1x128xi1> to vector<1x128xi1>
    %26 = vector.broadcast %25 : vector<1x128xi1> to vector<8x128xi1>
    %27 = vector.broadcast %cst_9 : f32 to vector<8x128xf32>
    %28 = arith.select %26, %24, %27 : vector<8x128xi1>, vector<8x128xf32>
    %29 = arith.addf %22, %28 : vector<8x128xf32>
    %30 = vector.extract_strided_slice %21 {offsets = [16, 0], sizes = [8, 128], strides = [1, 1]} : vector<24x128xf32> to vector<8x128xf32>
    %c127_i32_10 = arith.constant 127 : i32
    %31 = tpu.dynamic_rotate %30 by %c127_i32_10 dim 1 : vector<8x128xf32>, i32 -> vector<8x128xf32>
    %cst_11 = arith.constant 0.000000e+00 : f32
    %32 = vector.shape_cast %4 : vector<1x128xi1> to vector<1x128xi1>
    %33 = vector.broadcast %32 : vector<1x128xi1> to vector<8x128xi1>
    %34 = vector.broadcast %cst_11 : f32 to vector<8x128xf32>
    %35 = arith.select %33, %31, %34 : vector<8x128xi1>, vector<8x128xf32>
    %36 = arith.addf %29, %35 : vector<8x128xf32>
    %37 = vector.broadcast %8 : vector<8x1xf32> to vector<8x128xf32>
    %38 = arith.addf %36, %37 : vector<8x128xf32>
    %39 = arith.negf %38 : vector<8x128xf32>
    %40 = math.exp %39 : vector<8x128xf32>
    %cst_12 = arith.constant 1.000000e+00 : f32
    %41 = vector.broadcast %cst_12 : f32 to vector<8x128xf32>
    %42 = arith.addf %41, %40 : vector<8x128xf32>
    %43 = arith.divf %41, %42 : vector<8x128xf32>
    %44 = arith.mulf %43, %43 : vector<8x128xf32>
    %cst_13 = arith.constant dense<0.000000e+00> : vector<128xf32>
    %45 = vector.multi_reduction <add>, %44, %cst_13 [0] : vector<8x128xf32> to vector<128xf32>
    %46 = vector.shape_cast %45 : vector<128xf32> to vector<1x128xf32>
    %cst_14 = arith.constant 1.000000e-24 : f32
    %47 = vector.broadcast %cst_14 : f32 to vector<1x128xf32>
    %48 = arith.maximumf %46, %47 : vector<1x128xf32>
    %49 = math.rsqrt %48 : vector<1x128xf32>
    %50 = vector.broadcast %49 : vector<1x128xf32> to vector<8x128xf32>
    %51 = arith.mulf %43, %50 : vector<8x128xf32>
    %52 = vector.broadcast %9 : vector<8x1xf32> to vector<8x128xf32>
    %53 = arith.mulf %51, %52 : vector<8x128xf32>
    %54 = vector.extract_strided_slice %17 {offsets = [0, 0], sizes = [8, 1], strides = [1, 1]} : vector<8x2xf32> to vector<8x1xf32>
    %55 = vector.broadcast %54 : vector<8x1xf32> to vector<8x128xf32>
    %56 = arith.mulf %53, %55 : vector<8x128xf32>
    %57 = vector.extract_strided_slice %17 {offsets = [0, 1], sizes = [8, 1], strides = [1, 1]} : vector<8x2xf32> to vector<8x1xf32>
    %58 = vector.broadcast %57 : vector<8x1xf32> to vector<8x128xf32>
    %59 = arith.addf %56, %58 : vector<8x128xf32>
    %60 = arith.negf %59 : vector<8x128xf32>
    %61 = math.exp %60 : vector<8x128xf32>
    %cst_15 = arith.constant 1.000000e+00 : f32
    %62 = vector.broadcast %cst_15 : f32 to vector<8x128xf32>
    %63 = arith.addf %62, %61 : vector<8x128xf32>
    %64 = arith.divf %62, %63 : vector<8x128xf32>
    %cst_16 = arith.constant 0.000000e+00 : f32
    %65 = vector.shape_cast %6 : vector<1x128xi1> to vector<1x128xi1>
    %66 = vector.broadcast %65 : vector<1x128xi1> to vector<8x128xi1>
    %67 = vector.broadcast %cst_16 : f32 to vector<8x128xf32>
    %68 = arith.select %66, %64, %67 : vector<8x128xi1>, vector<8x128xf32>
    %c1 = arith.constant 1 : index
    %c0_17 = arith.constant 0 : index
    %c0_18 = arith.constant 0 : index
    %69 = vector.load %arg3[%c1, %c0_17, %c0_18] : memref<2x24x8xbf16, #tpu.memory_space<vmem>>, vector<1x24x8xbf16>
    %70 = vector.shape_cast %69 : vector<1x24x8xbf16> to vector<24x8xbf16>
    %71 = arith.truncf %68 : vector<8x128xf32> to vector<8x128xbf16>
    %cst_19 = arith.constant dense<0.000000e+00> : vector<24x128xf32>
    %72 = tpu.matmul %70, %71, %cst_19 {dimension_numbers = #tpu.dot_dimension_numbers<[1], [0], [0], [1], [0, 0, 1, 1], [], []>} : vector<24x8xbf16>, vector<8x128xbf16>, vector<24x128xf32> -> vector<24x128xf32>
    %73 = vector.extract_strided_slice %72 {offsets = [8, 0], sizes = [8, 128], strides = [1, 1]} : vector<24x128xf32> to vector<8x128xf32>
    %74 = vector.extract_strided_slice %72 {offsets = [0, 0], sizes = [8, 128], strides = [1, 1]} : vector<24x128xf32> to vector<8x128xf32>
    %c1_i32_20 = arith.constant 1 : i32
    %75 = tpu.dynamic_rotate %74 by %c1_i32_20 dim 1 : vector<8x128xf32>, i32 -> vector<8x128xf32>
    %cst_21 = arith.constant 0.000000e+00 : f32
    %76 = vector.shape_cast %2 : vector<1x128xi1> to vector<1x128xi1>
    %77 = vector.broadcast %76 : vector<1x128xi1> to vector<8x128xi1>
    %78 = vector.broadcast %cst_21 : f32 to vector<8x128xf32>
    %79 = arith.select %77, %75, %78 : vector<8x128xi1>, vector<8x128xf32>
    %80 = arith.addf %73, %79 : vector<8x128xf32>
    %81 = vector.extract_strided_slice %72 {offsets = [16, 0], sizes = [8, 128], strides = [1, 1]} : vector<24x128xf32> to vector<8x128xf32>
    %c127_i32_22 = arith.constant 127 : i32
    %82 = tpu.dynamic_rotate %81 by %c127_i32_22 dim 1 : vector<8x128xf32>, i32 -> vector<8x128xf32>
    %cst_23 = arith.constant 0.000000e+00 : f32
    %83 = vector.shape_cast %4 : vector<1x128xi1> to vector<1x128xi1>
    %84 = vector.broadcast %83 : vector<1x128xi1> to vector<8x128xi1>
    %85 = vector.broadcast %cst_23 : f32 to vector<8x128xf32>
    %86 = arith.select %84, %82, %85 : vector<8x128xi1>, vector<8x128xf32>
    %87 = arith.addf %80, %86 : vector<8x128xf32>
    %88 = vector.broadcast %10 : vector<8x1xf32> to vector<8x128xf32>
    %89 = arith.addf %87, %88 : vector<8x128xf32>
    %90 = arith.negf %89 : vector<8x128xf32>
    %91 = math.exp %90 : vector<8x128xf32>
    %cst_24 = arith.constant 1.000000e+00 : f32
    %92 = vector.broadcast %cst_24 : f32 to vector<8x128xf32>
    %93 = arith.addf %92, %91 : vector<8x128xf32>
    %94 = arith.divf %92, %93 : vector<8x128xf32>
    %95 = arith.mulf %94, %94 : vector<8x128xf32>
    %cst_25 = arith.constant dense<0.000000e+00> : vector<128xf32>
    %96 = vector.multi_reduction <add>, %95, %cst_25 [0] : vector<8x128xf32> to vector<128xf32>
    %97 = vector.shape_cast %96 : vector<128xf32> to vector<1x128xf32>
    %cst_26 = arith.constant 1.000000e-24 : f32
    %98 = vector.broadcast %cst_26 : f32 to vector<1x128xf32>
    %99 = arith.maximumf %97, %98 : vector<1x128xf32>
    %100 = math.rsqrt %99 : vector<1x128xf32>
    %101 = vector.broadcast %100 : vector<1x128xf32> to vector<8x128xf32>
    %102 = arith.mulf %94, %101 : vector<8x128xf32>
    %103 = vector.broadcast %11 : vector<8x1xf32> to vector<8x128xf32>
    %104 = arith.mulf %102, %103 : vector<8x128xf32>
    %105 = arith.negf %104 : vector<8x128xf32>
    %106 = math.exp %105 : vector<8x128xf32>
    %cst_27 = arith.constant 1.000000e+00 : f32
    %107 = vector.broadcast %cst_27 : f32 to vector<8x128xf32>
    %108 = arith.addf %107, %106 : vector<8x128xf32>
    %109 = arith.divf %107, %108 : vector<8x128xf32>
    %110 = arith.addf %109, %14 : vector<8x128xf32>
    %111 = arith.index_cast %c0_i32_1 : i32 to index
    %c0_28 = arith.constant 0 : index
    %c0_29 = arith.constant 0 : index
    %112 = vector.load %arg5[%111, %c0_28, %c0_29] : memref<1x8x128xf32, #tpu.memory_space<vmem>>, vector<1x8x128xf32>
    %113 = vector.shape_cast %112 : vector<1x8x128xf32> to vector<8x128xf32>
    %114 = vector.shape_cast %110 : vector<8x128xf32> to vector<1x8x128xf32>
    tpu.vector_store %arg5[%111, %c0_28, %c0_29], %114 {strides = array<i32>} : memref<1x8x128xf32, #tpu.memory_space<vmem>>, vector<1x8x128xf32>,
    %c1_i32_30 = arith.constant 1 : i32
    return
  }
  func.func @transform_0(%arg0: i32) -> (i32, i32, i32) {
    %c0_i32 = arith.constant 0 : i32
    %c0_i32_0 = arith.constant 0 : i32
    %c0_i32_1 = arith.constant 0 : i32
    return %arg0, %c0_i32, %c0_i32_0 : i32, i32, i32
  }
  func.func @transform_1(%arg0: i32) -> (i32, i32, i32) {
    %c0_i32 = arith.constant 0 : i32
    %c0_i32_0 = arith.constant 0 : i32
    %c0_i32_1 = arith.constant 0 : i32
    return %arg0, %c0_i32, %c0_i32_0 : i32, i32, i32
  }
  func.func @transform_2(%arg0: i32) -> (i32, i32, i32) {
    %c0_i32 = arith.constant 0 : i32
    %c0_i32_0 = arith.constant 0 : i32
    %c0_i32_1 = arith.constant 0 : i32
    %c0_i32_2 = arith.constant 0 : i32
    return %c0_i32, %c0_i32_0, %c0_i32_1 : i32, i32, i32
  }
  func.func @transform_3(%arg0: i32) -> (i32, i32) {
    %c0_i32 = arith.constant 0 : i32
    %c0_i32_0 = arith.constant 0 : i32
    %c0_i32_1 = arith.constant 0 : i32
    return %c0_i32, %c0_i32_0 : i32, i32
  }
  func.func @transform_4(%arg0: i32) -> (i32, i32, i32) {
    %c0_i32 = arith.constant 0 : i32
    %c0_i32_0 = arith.constant 0 : i32
    %c0_i32_1 = arith.constant 0 : i32
    return %arg0, %c0_i32, %c0_i32_0 : i32, i32, i32
  }
}

</mosaic_0001>

<llo_original>
// kernel: tpu_custom_call.1
$region0: #{tpu_custom_call.1}
  #allocation0 [shape = 'u32[]', space=smem, size = 0x4, offset = 0x4, fixed_abs, tag = 'smem constant byte address 0x4 - core index']
  #allocation1 [shape = 'u32[144,128]{1,0:T(1,128)}', space=vmem, size = 0x12000, scoped, tag = 'internal scratch']
  %s0 = inlined_call_operand.vmem [shape: f32[2,8,128], index: 0, kind: input, shape index: {}]
  %s1 = inlined_call_operand.vmem [shape: f32[2,8,2], index: 1, kind: input, shape index: {}]
  %s2 = inlined_call_operand.vmem [shape: bf16[2,24,8], index: 2, kind: input, shape index: {}]
  %s3 = inlined_call_operand.vmem [shape: f32[8,4], index: 3, kind: input, shape index: {}]
  %s4 = inlined_call_operand.hbm [shape: f32[2,8,128], index: 4, kind: output, shape index: {}]
  %s5 = sld [smem:[#allocation0]]
  $region49: #{tpu_custom_call.1} parent=0
    _
  %s7 = ssub.s32 1, %s5
  %s8 = scalar_select 0, %s7, %s5
  $region1: #{tpu_custom_call.1} parent=0
    #allocation2 [shape = 'u8[8192]{0}', space=vmem, size = 0x2000, scoped, tag = 'output window, operand 0']
    #allocation3 [shape = 's32[2]{0}', space=sflag, size = 0x8, scoped, tag = 'scoped memory for tpu_custom_call.1']
    %9 = vsyncpa [#allocation3], 0
    %s10 = scalar_lea.sflag [#allocation3], 1
    %11 = vsyncpa %s10, 0
    loop: start=0, step=1, limit=4
    $region2: #{tpu_custom_call.1} parent=1 // loop_pre_header
      _
    $region3: #{tpu_custom_call.1} parent=1 // loop_header
      %s13 = sphi 0, %s17
      %p14 = scmp.ge.s32.totalorder %s13, 4
      %s23 = sphi 0, %s25
      %s26 = sphi 0, %s23
      %s27 = sphi 0, %s26
      %s43 = sphi 0, %s27
      %s49 = sphi 0, %s51
      %s52 = sphi 0, %s49
      %s53 = sphi 0, %s52
      %s69 = sphi 0, %s53
      %s73 = sphi 0, %s73
      %s75 = sphi 0, %s73
      %s76 = sphi 0, %s75
      %s90 = sphi 0, %s76
      %s94 = sphi 0, %s94
      %s96 = sphi 0, %s94
      %s97 = sphi 0, %s96
      %s111 = sphi 0, %s97
      %s117 = sphi 0, %s119
      %s120 = sphi 0, %s117
      %s121 = sphi 0, %s120
      %s137 = sphi 0, %s121
    $region4: #{tpu_custom_call.1} parent=1 // loop_header_branch
      %16 = sbr.rel (%p14) target = $region8
    $region5: #{tpu_custom_call.1} parent=1 // loop_body
      %s18 = ssub.s32 %s13, 1
      %s19 = ssub.s32 %s13, 2
      %s20 = sadd.s32 %s13, 1
      %s21 = ssub.s32 %s13, %s20
      %p22 = scmp.eq.s32.totalorder %s21, 0
      %s24 = sadd.s32 %s23, 1
      %s25 = scalar_select %p22, %s23, %s24
      %p28 = pneg %p22
      %p29 = scmp.eq.s32.totalorder %s13, 1
      %p30 = por %p28, %p29
      %p31 = scmp.ne.s32.totalorder %s23, %s26
      %p32 = scmp.eq.s32.totalorder %s13, 0
      %p33 = por %p31, %p32
      %p34 = scmp.ne.s32.totalorder %s23, %s26
      %p35 = scmp.eq.s32.totalorder %s18, 1
      %p36 = por %p34, %p35
      %p37 = scmp.ne.s32.totalorder %s26, %s27
      %p38 = scmp.eq.s32.totalorder %s18, 0
      %p39 = por %p37, %p38
      %p40 = scmp.ne.s32.totalorder %s26, %s27
      %p41 = scmp.eq.s32.totalorder %s19, 1
      %p42 = por %p40, %p41
      %p44 = scmp.ne.s32.totalorder %s27, %s43
      %p45 = scmp.eq.s32.totalorder %s19, 0
      %p46 = por %p44, %p45
      %s47 = ssub.s32 %s13, %s20
      %p48 = scmp.eq.s32.totalorder %s47, 0
      %s50 = sadd.s32 %s49, 1
      %s51 = scalar_select %p48, %s49, %s50
      %p54 = pneg %p48
      %p55 = scmp.eq.s32.totalorder %s13, 1
      %p56 = por %p54, %p55
      %p57 = scmp.ne.s32.totalorder %s49, %s52
      %p58 = scmp.eq.s32.totalorder %s13, 0
      %p59 = por %p57, %p58
      %p60 = scmp.ne.s32.totalorder %s49, %s52
      %p61 = scmp.eq.s32.totalorder %s18, 1
      %p62 = por %p60, %p61
      %p63 = scmp.ne.s32.totalorder %s52, %s53
      %p64 = scmp.eq.s32.totalorder %s18, 0
      %p65 = por %p63, %p64
      %p66 = scmp.ne.s32.totalorder %s52, %s53
      %p67 = scmp.eq.s32.totalorder %s19, 1
      %p68 = por %p66, %p67
      %p70 = scmp.ne.s32.totalorder %s53, %s69
      %p71 = scmp.eq.s32.totalorder %s19, 0
      %p72 = por %p70, %p71
      %s74 = sadd.s32 %s73, 1
      %p77 = scmp.eq.s32.totalorder %s13, 1
      %p78 = scmp.ne.s32.totalorder %s73, %s75
      %p79 = scmp.eq.s32.totalorder %s13, 0
      %p80 = por %p78, %p79
      %p81 = scmp.ne.s32.totalorder %s73, %s75
      %p82 = scmp.eq.s32.totalorder %s18, 1
      %p83 = por %p81, %p82
      %p84 = scmp.ne.s32.totalorder %s75, %s76
      %p85 = scmp.eq.s32.totalorder %s18, 0
      %p86 = por %p84, %p85
      %p87 = scmp.ne.s32.totalorder %s75, %s76
      %p88 = scmp.eq.s32.totalorder %s19, 1
      %p89 = por %p87, %p88
      %p91 = scmp.ne.s32.totalorder %s76, %s90
      %p92 = scmp.eq.s32.totalorder %s19, 0
      %p93 = por %p91, %p92
      %s95 = sadd.s32 %s94, 1
      %p98 = scmp.eq.s32.totalorder %s13, 1
      %p99 = scmp.ne.s32.totalorder %s94, %s96
      %p100 = scmp.eq.s32.totalorder %s13, 0
      %p101 = por %p99, %p100
      %p102 = scmp.ne.s32.totalorder %s94, %s96
      %p103 = scmp.eq.s32.totalorder %s18, 1
      %p104 = por %p102, %p103
      %p105 = scmp.ne.s32.totalorder %s96, %s97
      %p106 = scmp.eq.s32.totalorder %s18, 0
      %p107 = por %p105, %p106
      %p108 = scmp.ne.s32.totalorder %s96, %s97
      %p109 = scmp.eq.s32.totalorder %s19, 1
      %p110 = por %p108, %p109
      %p112 = scmp.ne.s32.totalorder %s97, %s111
      %p113 = scmp.eq.s32.totalorder %s19, 0
      %p114 = por %p112, %p113
      %s115 = ssub.s32 %s13, %s20
      %p116 = scmp.eq.s32.totalorder %s115, 0
      %s118 = sadd.s32 %s117, 1
      %s119 = scalar_select %p116, %s117, %s118
      %p122 = pneg %p116
      %p123 = scmp.eq.s32.totalorder %s13, 1
      %p124 = por %p122, %p123
      %p125 = scmp.ne.s32.totalorder %s117, %s120
      %p126 = scmp.eq.s32.totalorder %s13, 0
      %p127 = por %p125, %p126
      %p128 = scmp.ne.s32.totalorder %s117, %s120
      %p129 = scmp.eq.s32.totalorder %s18, 1
      %p130 = por %p128, %p129
      %p131 = scmp.ne.s32.totalorder %s120, %s121
      %p132 = scmp.eq.s32.totalorder %s18, 0
      %p133 = por %p131, %p132
      %p134 = scmp.ne.s32.totalorder %s120, %s121
      %p135 = scmp.eq.s32.totalorder %s19, 1
      %p136 = por %p134, %p135
      %p138 = scmp.ne.s32.totalorder %s121, %s137
      %p139 = scmp.eq.s32.totalorder %s19, 0
      %p140 = por %p138, %p139
      %p141 = scmp.le.s32.totalorder 1, %s13
      %p142 = scmp.lt.s32.totalorder %s13, 3
      %p143 = pnand %p141, %p142
      %p144 = pneg %p143
      // Predicated region
      $region9: #{tpu_custom_call.1} parent=5 // pred_check
        _
      $region10: #{tpu_custom_call.1} parent=5 // pred_check_branch
        %146 = sbr.rel (%p143) target = $region12
      $region11: #{tpu_custom_call.1} parent=5 // pred_region
        %s147 = ssub.s32 %s13, 1
        // Predicated region
        $region13: #{tpu_custom_call.1} parent=11 // pred_check
          %p148 = pneg %p86
        $region14: #{tpu_custom_call.1} parent=11 // pred_check_branch
          %150 = sbr.rel (%p148) target = $region16
        $region15: #{tpu_custom_call.1} parent=11 // pred_region
          _
        $region16: #{tpu_custom_call.1} parent=11 // pred_fallthru
          _
        // Predicated region
        $region17: #{tpu_custom_call.1} parent=11 // pred_check
          %p151 = pneg %p107
        $region18: #{tpu_custom_call.1} parent=11 // pred_check_branch
          %153 = sbr.rel (%p151) target = $region20
        $region19: #{tpu_custom_call.1} parent=11 // pred_region
          _
        $region20: #{tpu_custom_call.1} parent=11 // pred_fallthru
          _
      $region12: #{tpu_custom_call.1} parent=5 // pred_fallthru
        _
      %p154 = scmp.lt.s32.totalorder %s13, 2
      // Predicated region
      $region21: #{tpu_custom_call.1} parent=5 // pred_check
        %p155 = pneg %p154
      $region22: #{tpu_custom_call.1} parent=5 // pred_check_branch
        %157 = sbr.rel (%p155) target = $region24
      $region23: #{tpu_custom_call.1} parent=5 // pred_region
        // Predicated region
        $region25: #{tpu_custom_call.1} parent=23 // pred_check
          %p158 = pneg %p33
        $region26: #{tpu_custom_call.1} parent=23 // pred_check_branch
          %160 = sbr.rel (%p158) target = $region28
        $region27: #{tpu_custom_call.1} parent=23 // pred_region
          %p161 = scmp.lt.s32.totalorder %s13, 1
          %s162 = scalar_select %p161, %s13, 1
          %s163 = smul.addr %s162, 8
          %s164 = scalar_lea.vmem %s0, %s163
        $region28: #{tpu_custom_call.1} parent=23 // pred_fallthru
          _
        // Predicated region
        $region29: #{tpu_custom_call.1} parent=23 // pred_check
          %p165 = pneg %p59
        $region30: #{tpu_custom_call.1} parent=23 // pred_check_branch
          %167 = sbr.rel (%p165) target = $region32
        $region31: #{tpu_custom_call.1} parent=23 // pred_region
          %p168 = scmp.lt.s32.totalorder %s13, 1
          %s169 = scalar_select %p168, %s13, 1
          %s170 = smul.addr %s169, 8
          %s171 = scalar_lea.vmem %s1, %s170
        $region32: #{tpu_custom_call.1} parent=23 // pred_fallthru
          _
      $region24: #{tpu_custom_call.1} parent=5 // pred_fallthru
        _
      %p172 = scmp.le.s32.totalorder 1, %s13
      %p173 = scmp.lt.s32.totalorder %s13, 3
      %p174 = pnand %p172, %p173
      %p175 = pneg %p174
      // Predicated region
      $region33: #{tpu_custom_call.1} parent=5 // pred_check
        _
      $region34: #{tpu_custom_call.1} parent=5 // pred_check_branch
        %177 = sbr.rel (%p174) target = $region36
      $region35: #{tpu_custom_call.1} parent=5 // pred_region
        %s178 = ssub.s32 %s13, 1
        %p179 = scmp.lt.s32.totalorder %s18, 1
        %s180 = scalar_select %p179, %s18, 1
        %s181 = smul.addr %s180, 8
        %s182 = scalar_lea.vmem %s0, %s181
        %p183 = pneg %p39
        %p184 = pneg %p36
        %p185 = scmp.lt.s32.totalorder %s18, 1
        %s186 = scalar_select %p185, %s18, 1
        %s187 = smul.addr %s186, 8
        %s188 = scalar_lea.vmem %s1, %s187
        %p189 = pneg %p65
        %p190 = pneg %p62
        %p191 = pneg %p86
        %p192 = pneg %p83
        %p193 = pneg %p107
        %p194 = pneg %p104
        %p195 = pneg %p133
        %p196 = pneg %p130
        %s197 = sand.u32 %s120, 1
        %s198 = scalar_lea.sflag [#allocation3], %s197
        %s199 = sand.u32 %s120, 1
        %s200 = smul.addr %s199, 8
        %s201 = scalar_lea.vmem [#allocation2], %s200
        %p202 = scmp.lt.s32.totalorder %s18, 1
        %s203 = scalar_select %p202, %s18, 1
        %s204 = smul.addr %s203, 8
        %s205 = scalar_lea.vmem %s0, %s204
        %p206 = scmp.lt.s32.totalorder %s18, 1
        %s207 = scalar_select %p206, %s18, 1
        %s208 = smul.addr %s207, 8
        %s209 = scalar_lea.vmem %s1, %s208
        %v211 = vlaneseq
        %v212 = vand.u32 %v211, 127
        %vm213 = vcmp.ne.s32.totalorder %v212, 0
        %vm214 = vcmp.ne.s32.totalorder %v212, 127
        %vm215 = vcmp.lt.s32.totalorder %v212, 16
        %v216 = vld [vmem:[%s3] sm:$0xff]
        %v217 = vld [vmem:[%s205] sm:$0xff]
        %v218 = vld [vmem:[%s209] sm:$0xff]
        %v219 = vld [vmem:[%s2] sm:$0xf]
        %v220 = vld [vmem:[%s2 + $0x4] sm:$0xf]
        %v221 = vld [vmem:[%s2 + $0x8] sm:$0xf]
        %v222 = vpack.c.bf16 %v217, %v217
        %v226 = vunpack.c.l.b16 %v219
        %v227 = vunpack.c.l.b16 %v220
        %v228 = vunpack.c.l.b16 %v221
        %v229 = vpack.c.b16 %v227, %v226
        %v230 = vpack.c.b16 %v228, %v228
        %vm231 = vcmask 64512
        %v233 = vsel %vm231, %v229, 0
        %v236 = vsel %vm231, %v230, 0
        %vm238 = vcmask 1043456
        %v240 = vsel %vm238, %v222, 0
        %242 = vmatprep.subr.bf16.mxu0 0
        %243 = vmatpush1.bf16.msra.mxu0 %v240
        %244 = vmatprep.subr.bf16.mxu0 0
        %245 = vmatpush1.bf16.msra.mxu0 0
        %246 = vmatprep.subr.bf16.mxu0 0
        %247 = vmatpush1.bf16.msra.mxu0 0
        %248 = vmatprep.subr.bf16.mxu0 0
        %249 = vmatpush1.bf16.msra.mxu0 0
        %250 = vmatprep.subr.bf16.mxu0 0
        %251 = vmatpush1.bf16.msra.mxu0 0
        %252 = vmatprep.subr.bf16.mxu0 0
        %253 = vmatpush1.bf16.msra.mxu0 0
        %254 = vmatprep.subr.bf16.mxu0 0
        %255 = vmatpush1.bf16.msra.mxu0 0
        %256 = vmatprep.subr.bf16.mxu0 0
        %257 = vmatpush1.bf16.msra.mxu0 0
        %258 = vmatprep.subr.bf16.mxu0 0
        %259 = vmatpush1.bf16.msra.mxu0 0
        %260 = vmatprep.subr.bf16.mxu0 0
        %261 = vmatpush1.bf16.msra.mxu0 0
        %262 = vmatprep.subr.bf16.mxu0 0
        %263 = vmatpush1.bf16.msra.mxu0 0
        %264 = vmatprep.subr.bf16.mxu0 0
        %265 = vmatpush1.bf16.msra.mxu0 0
        %266 = vmatprep.subr.bf16.mxu0 0
        %267 = vmatpush1.bf16.msra.mxu0 0
        %268 = vmatprep.subr.bf16.mxu0 0
        %269 = vmatpush1.bf16.msra.mxu0 0
        %270 = vmatprep.subr.bf16.mxu0 0
        %271 = vmatpush1.bf16.msra.mxu0 0
        %272 = vmatprep.subr.bf16.mxu0 0
        %273 = vmatpush1.bf16.msra.mxu0 0
        %274 = vmatprep.mubr.bf16.mxu0 0
        %275 = vmatmul.mubr.bf16.gmra.mrb[0].mxu0 %v233
        %v276 = vpop.f32.mrb[0].mxu0
        %v277 = vadd.f32 0.0, %v276
        %v278 = vpop.f32.mrb[0].mxu0
        %v279 = vpop.f32.mrb[0].mxu0
        %v280 = vadd.f32 0.0, %v279
        %v281 = vpop.f32.mrb[0].mxu0
        %282 = vmatprep.mubr.bf16.mxu0 0
        %283 = vmatmul.mubr.bf16.gmra.mrb[0].mxu0 %v236
        %v284 = vpop.f32.mrb[0].mxu0
        %v285 = vadd.f32 0.0, %v284
        %v286 = vpop.f32.mrb[0].mxu0
        %v287 = vpop.f32.mrb[0].mxu0
        %v288 = vpop.f32.mrb[0].mxu0
        %289 = vdwg.mxu0
        %290 = vrot.lane.b32.xlu0 %v277, 1
        %v291 = vpop.permute.xlu0 %290
        %v292 = vsel %vm213, 1, 0
        %vm293 = vcmp.eq.s32.totalorder %v292, 1
        %v294 = vsel %vm293, %v291, 0.0
        %v295 = vadd.f32 %v280, %v294
        %296 = vrot.lane.b32.xlu0 %v285, 127
        %v297 = vpop.permute.xlu0 %296
        %v298 = vsel %vm214, 1, 0
        %vm299 = vcmp.eq.s32.totalorder %v298, 1
        %v300 = vsel %vm299, %v297, 0.0
        %v301 = vadd.f32 %v295, %v300
        %303 = vset.pattern.permute.xlu0 0
        %304 = vperm.xlu0 %303, %v216
        %v305 = vpop.permute.xlu0 %304
        %v307 = vadd.f32 %v301, %v305
        %v308 = vxor.u32 %v307, 2147483648
        %v309 = vmul.f32 %v308, 1.442695
        %v310 = vpow.pop %v309
        %v311 = vadd.f32 %v310, 1.0
        %v312 = vrcp.pop %v311
        %v313 = vmul.f32 1.0, %v312
        %v314 = vmul.f32 %v313, %v313
        %v315 = vrot.slane %v314, 4
        %v316 = vadd.f32 %v314, %v315
        %v317 = vrot.slane %v316, 2
        %v318 = vadd.f32 %v316, %v317
        %v319 = vrot.slane %v318, 1
        %v320 = vadd.f32 %v318, %v319
        %v321 = vmax.f32 %v320, 1e-24
        %v322 = vrsqrt.pop %v321
        %v323 = vmul.f32 %v313, %v322
        %324 = vset.pattern.permute.xlu0 1
        %325 = vperm.xlu0 %324, %v216
        %v326 = vpop.permute.xlu0 %325
        %v328 = vmul.f32 %v323, %v326
        %330 = vset.pattern.permute.xlu0 0
        %331 = vperm.xlu0 %330, %v218
        %v332 = vpop.permute.xlu0 %331
        %v334 = vmul.f32 %v328, %v332
        %335 = vset.pattern.permute.xlu0 1
        %336 = vperm.xlu0 %335, %v218
        %v337 = vpop.permute.xlu0 %336
        %v339 = vadd.f32 %v334, %v337
        %v340 = vxor.u32 %v339, 2147483648
        %v341 = vmul.f32 %v340, 1.442695
        %v342 = vpow.pop %v341
        %v343 = vadd.f32 %v342, 1.0
        %v344 = vrcp.pop %v343
        %v345 = vmul.f32 1.0, %v344
        %v346 = vsel %vm215, 1, 0
        %vm347 = vcmp.eq.s32.totalorder %v346, 1
        %v348 = vsel %vm347, %v345, 0.0
        %s349 = scalar_lea.vmem %s2, 12
        %v350 = vld [vmem:[%s349] sm:$0xf]
        %v351 = vld [vmem:[%s349 + $0x4] sm:$0xf]
        %v352 = vld [vmem:[%s349 + $0x8] sm:$0xf]
        %v353 = vpack.c.bf16 %v348, %v348
        %v357 = vunpack.c.l.b16 %v350
        %v358 = vunpack.c.l.b16 %v351
        %v359 = vunpack.c.l.b16 %v352
        %v360 = vpack.c.b16 %v358, %v357
        %v361 = vpack.c.b16 %v359, %v359
        %v363 = vsel %vm231, %v360, 0
        %v366 = vsel %vm231, %v361, 0
        %v369 = vsel %vm238, %v353, 0
        %371 = vmatprep.subr.bf16.mxu0 0
        %372 = vmatpush1.bf16.msra.mxu0 %v369
        %373 = vmatprep.subr.bf16.mxu0 0
        %374 = vmatpush1.bf16.msra.mxu0 0
        %375 = vmatprep.subr.bf16.mxu0 0
        %376 = vmatpush1.bf16.msra.mxu0 0
        %377 = vmatprep.subr.bf16.mxu0 0
        %378 = vmatpush1.bf16.msra.mxu0 0
        %379 = vmatprep.subr.bf16.mxu0 0
        %380 = vmatpush1.bf16.msra.mxu0 0
        %381 = vmatprep.subr.bf16.mxu0 0
        %382 = vmatpush1.bf16.msra.mxu0 0
        %383 = vmatprep.subr.bf16.mxu0 0
        %384 = vmatpush1.bf16.msra.mxu0 0
        %385 = vmatprep.subr.bf16.mxu0 0
        %386 = vmatpush1.bf16.msra.mxu0 0
        %387 = vmatprep.subr.bf16.mxu0 0
        %388 = vmatpush1.bf16.msra.mxu0 0
        %389 = vmatprep.subr.bf16.mxu0 0
        %390 = vmatpush1.bf16.msra.mxu0 0
        %391 = vmatprep.subr.bf16.mxu0 0
        %392 = vmatpush1.bf16.msra.mxu0 0
        %393 = vmatprep.subr.bf16.mxu0 0
        %394 = vmatpush1.bf16.msra.mxu0 0
        %395 = vmatprep.subr.bf16.mxu0 0
        %396 = vmatpush1.bf16.msra.mxu0 0
        %397 = vmatprep.subr.bf16.mxu0 0
        %398 = vmatpush1.bf16.msra.mxu0 0
        %399 = vmatprep.subr.bf16.mxu0 0
        %400 = vmatpush1.bf16.msra.mxu0 0
        %401 = vmatprep.subr.bf16.mxu0 0
        %402 = vmatpush1.bf16.msra.mxu0 0
        %403 = vmatprep.mubr.bf16.mxu0 0
        %404 = vmatmul.mubr.bf16.gmra.mrb[0].mxu0 %v363
        %v405 = vpop.f32.mrb[0].mxu0
        %v406 = vadd.f32 0.0, %v405
        %v407 = vpop.f32.mrb[0].mxu0
        %v408 = vpop.f32.mrb[0].mxu0
        %v409 = vadd.f32 0.0, %v408
        %v410 = vpop.f32.mrb[0].mxu0
        %411 = vmatprep.mubr.bf16.mxu0 0
        %412 = vmatmul.mubr.bf16.gmra.mrb[0].mxu0 %v366
        %v413 = vpop.f32.mrb[0].mxu0
        %v414 = vadd.f32 0.0, %v413
        %v415 = vpop.f32.mrb[0].mxu0
        %v416 = vpop.f32.mrb[0].mxu0
        %v417 = vpop.f32.mrb[0].mxu0
        %418 = vdwg.mxu0
        %419 = vrot.lane.b32.xlu0 %v406, 1
        %v420 = vpop.permute.xlu0 %419
        %v421 = vsel %vm293, %v420, 0.0
        %v422 = vadd.f32 %v409, %v421
        %423 = vrot.lane.b32.xlu0 %v414, 127
        %v424 = vpop.permute.xlu0 %423
        %v425 = vsel %vm299, %v424, 0.0
        %v426 = vadd.f32 %v422, %v425
        %427 = vset.pattern.permute.xlu0 2
        %428 = vperm.xlu0 %427, %v216
        %v429 = vpop.permute.xlu0 %428
        %v431 = vadd.f32 %v426, %v429
        %v432 = vxor.u32 %v431, 2147483648
        %v433 = vmul.f32 %v432, 1.442695
        %v434 = vpow.pop %v433
        %v435 = vadd.f32 %v434, 1.0
        %v436 = vrcp.pop %v435
        %v437 = vmul.f32 1.0, %v436
        %v438 = vmul.f32 %v437, %v437
        %v439 = vrot.slane %v438, 4
        %v440 = vadd.f32 %v438, %v439
        %v441 = vrot.slane %v440, 2
        %v442 = vadd.f32 %v440, %v441
        %v443 = vrot.slane %v442, 1
        %v444 = vadd.f32 %v442, %v443
        %v445 = vmax.f32 %v444, 1e-24
        %v446 = vrsqrt.pop %v445
        %v447 = vmul.f32 %v437, %v446
        %448 = vset.pattern.permute.xlu0 3
        %449 = vperm.xlu0 %448, %v216
        %v450 = vpop.permute.xlu0 %449
        %v452 = vmul.f32 %v447, %v450
        %v453 = vxor.u32 %v452, 2147483648
        %v454 = vmul.f32 %v453, 1.442695
        %v455 = vpow.pop %v454
        %v456 = vadd.f32 %v455, 1.0
        %v457 = vrcp.pop %v456
        %v458 = vmul.f32 1.0, %v457
        %v459 = vadd.f32 %v458, %v217
        %460 = vst [vmem:[%s201] sm:$0xff] %v459
        %s461 = sand.u32 %s120, 1
        %s462 = scalar_lea.sflag [#allocation3], %s461
        %s463 = sand.u32 %s120, 1
        %s464 = smul.addr %s463, 8
        %s465 = scalar_lea.vmem [#allocation2], %s464
        // Predicated region
        $region37: #{tpu_custom_call.1} parent=35 // pred_check
          %p466 = pneg %p130
        $region38: #{tpu_custom_call.1} parent=35 // pred_check_branch
          %468 = sbr.rel (%p466) target = $region40
        $region39: #{tpu_custom_call.1} parent=35 // pred_region
          %s470 = ssub.s32 128, 128
          %471 = vsyncadd %s462, %s470
          %s472 = smul.addr %s18, 128
          %s473 = scalar_lea.hbm %s4, %s472
          %s475 = sshll.u32 %s465, 4
          %s476 = int_to_ptr.vmem [resolvable:$true] %s475
          %478 = dma.vmem_to_hbm [thread:$0]  %s476, 128, %s473, %s462
        $region40: #{tpu_custom_call.1} parent=35 // pred_fallthru
          _
      $region36: #{tpu_custom_call.1} parent=5 // pred_fallthru
        _
      %p479 = scmp.le.s32.totalorder 2, %s13
      // Predicated region
      $region41: #{tpu_custom_call.1} parent=5 // pred_check
        %p480 = pneg %p479
      $region42: #{tpu_custom_call.1} parent=5 // pred_check_branch
        %482 = sbr.rel (%p480) target = $region44
      $region43: #{tpu_custom_call.1} parent=5 // pred_region
        %s483 = ssub.s32 %s13, 2
        // Predicated region
        $region45: #{tpu_custom_call.1} parent=43 // pred_check
          %p484 = pneg %p136
        $region46: #{tpu_custom_call.1} parent=43 // pred_check_branch
          %486 = sbr.rel (%p484) target = $region48
        $region47: #{tpu_custom_call.1} parent=43 // pred_region
          %s487 = sand.u32 %s121, 1
          %s488 = scalar_lea.sflag [#allocation3], %s487
          %s489 = sand.u32 %s121, 1
          %s490 = smul.addr %s489, 8
          %s491 = scalar_lea.vmem [#allocation2], %s490
          %492 = dma.done %s488, 128
        $region48: #{tpu_custom_call.1} parent=43 // pred_fallthru
          _
      $region44: #{tpu_custom_call.1} parent=5 // pred_fallthru
        _
    $region6: #{tpu_custom_call.1} parent=1 // loop_footer
      %s17 = sadd.s32 1, %s13
    $region7: #{tpu_custom_call.1} parent=1 // loop_footer_branch
      %12 = sbr.rel target = $region3
    $region8: #{tpu_custom_call.1} parent=1 // loop_exit
      _
    %493 = vsyncpa [#allocation3], 1
    %s494 = scalar_lea.sflag [#allocation3], 1
    %495 = vsyncpa %s494, 1

</llo_original>
